<compile_context>
chip_gen: v7x
topology: tpu7x:2x2x1
jax: 0.10.0
libtpu: 0.0.40
codegen_flags: <defaults>
</compile_context>

<pallas_src>
import functools

import jax
import jax.numpy as jnp
from jax.experimental import pallas as pl
from jax.experimental.pallas import tpu as pltpu

_LANES = 128
_SUBLANES = 8
# ~4 MiB of input per block -> 8192 rows for f32, 16384 for bf16. Double-buffered twice
# (two inputs) this is ~16 MiB of VMEM, safe on every generation once the scoped limit is
# raised explicitly (v5e default scoped VMEM is only 16 MiB; v7x physical is 64 MiB/TC).
_MAX_BLOCK_BYTES = 4 * 1024 * 1024
# Leading "parallel" grid axis: shards the reduction across v7x's 2 TensorCores; on
# single-core v5e/v6e it is just a harmless outer loop of 2.
_NUM_CORES = 2


def _l1_sum_kernel(a_ref, b_ref, o_ref, acc_ref, *, block_rows, valid_rows, steps_per_core):
    c = pl.program_id(0)            # core / "parallel" axis
    i = pl.program_id(1)            # reduction steps owned by this core
    g = c * steps_per_core + i      # global block index

    @pl.when(i == 0)
    def _():
        acc_ref[...] = jnp.zeros_like(acc_ref)

    d = jnp.abs(a_ref[...].astype(jnp.float32) - b_ref[...].astype(jnp.float32))

    block_full = (g + 1) * block_rows <= valid_rows

    @pl.when(block_full)
    def _():
        # Pure VPU: fold the block into the (8, 128) vreg accumulator (no XLU in the loop).
        acc_ref[...] += jnp.sum(d.reshape(-1, _SUBLANES, _LANES), axis=0)

    @pl.when(jnp.logical_not(block_full))
    def _():
        # Partial (or fully out-of-range) trailing block: rows past the real data hold
        # undefined values in the VMEM window; zero them before accumulating.
        row = jax.lax.broadcasted_iota(jnp.int32, d.shape, 0) + g * block_rows
        dm = jnp.where(row < valid_rows, d, 0.0)
        acc_ref[...] += jnp.sum(dm.reshape(-1, _SUBLANES, _LANES), axis=0)

    @pl.when(i == steps_per_core - 1)
    def _():
        # Write this core's (8, 128) partial once; the cheap final reduce is in the wrapper.
        o_ref[0] = acc_ref[...]


def l1_loss_pallas(pred, target, loss_weight=0.01):
    """loss_weight * mean(|pred - target|), computed with a tiled, megacore-sharded Pallas reduction."""
    assert pred.shape == target.shape, "pred/target shape mismatch"
    n = 1
    for s in pred.shape:
        n *= int(s)
    assert n > 0, "empty input"

    a = pred.reshape(-1)
    b = target.reshape(-1)

    chunk = _SUBLANES * _LANES                 # 1024
    n_main = (n // chunk) * chunk              # 8x128-aligned prefix handled by the kernel
    rows = n_main // _LANES                    # multiple of 8

    total = jnp.zeros((), jnp.float32)

    if rows > 0:
        itemsize = int(jnp.dtype(pred.dtype).itemsize)
        max_block_rows = max(
            _SUBLANES,
            (_MAX_BLOCK_BYTES // (_LANES * itemsize)) // _SUBLANES * _SUBLANES,
        )
        block_rows = min(max_block_rows, rows)
        n_blocks = pl.cdiv(rows, block_rows)
        steps_per_core = pl.cdiv(n_blocks, _NUM_CORES)

        if n_main == n:
            a_main, b_main = a, b              # aligned fast path: metadata-only reshape
        else:
            a_main, b_main = a[:n_main], b[:n_main]
        a2 = a_main.reshape(rows, _LANES)
        b2 = b_main.reshape(rows, _LANES)

        block_bytes = block_rows * _LANES * itemsize
        # 2 inputs x 2 pipeline buffers + headroom for output/scratch/internal buffers.
        vmem_limit = max(16 * 1024 * 1024,
                         min(64 * 1024 * 1024, 4 * block_bytes + (4 << 20)))

        kernel = functools.partial(
            _l1_sum_kernel,
            block_rows=block_rows,
            valid_rows=rows,
            steps_per_core=steps_per_core,
        )

        partials = pl.pallas_call(
            kernel,
            out_shape=jax.ShapeDtypeStruct((_NUM_CORES, _SUBLANES, _LANES), jnp.float32),
            grid_spec=pltpu.PrefetchScalarGridSpec(
                num_scalar_prefetch=0,
                grid=(_NUM_CORES, steps_per_core),
                in_specs=[
                    pl.BlockSpec((block_rows, _LANES),
                                 lambda c, i: (c * steps_per_core + i, 0)),
                    pl.BlockSpec((block_rows, _LANES),
                                 lambda c, i: (c * steps_per_core + i, 0)),
                ],
                out_specs=pl.BlockSpec((1, _SUBLANES, _LANES), lambda c, i: (c, 0, 0)),
                scratch_shapes=[pltpu.VMEM((_SUBLANES, _LANES), jnp.float32)],
            ),
            compiler_params=pltpu.CompilerParams(
                dimension_semantics=("parallel", "arbitrary"),
                vmem_limit_bytes=int(vmem_limit),
            ),
        )(a2, b2)
        total = total + jnp.sum(partials)

    if n_main != n:
        # <1024-element unaligned tail (covers partial lane rows too) handled outside the kernel.
        tail = jnp.abs(a[n_main:].astype(jnp.float32) - b[n_main:].astype(jnp.float32))
        total = total + jnp.sum(tail)

    # NOTE: loss_weight / n is a Python constant -> one compile per (shape, dtype, weight).
    return total * (float(loss_weight) / float(n))


class L1Loss:
    """Pallas-TPU port of the PyTorch L1Loss module: loss_weight * mean(|pred - target|)."""

    def __init__(self, loss_weight=0.01):
        self.loss_weight = loss_weight

    def __call__(self, pred, target):
        return l1_loss_pallas(pred, target, loss_weight=self.loss_weight)


if __name__ == "__main__":
    key = jax.random.PRNGKey(0)
    k1, k2 = jax.random.split(key)
    pred = jax.random.uniform(k1, (2, 4, 16, 16), jnp.float32)
    target = jax.random.uniform(k2, (2, 4, 16, 16), jnp.float32)

    loss_fn = L1Loss(loss_weight=0.01)
    loss = jax.block_until_ready(loss_fn(pred, target))

    ref = 0.01 * jnp.mean(jnp.abs(pred - target))
    assert loss.shape == () and bool(jnp.isfinite(loss))
    assert abs(float(loss) - float(ref)) < 1e-6 * max(1.0, abs(float(ref)))

    # Also exercise an unaligned-size path (tail handled in the wrapper).
    k3, k4 = jax.random.split(k1)
    p2 = jax.random.uniform(k3, (3, 5, 7, 11), jnp.float32)   # 1155 elements, not 1024-aligned
    t2 = jax.random.uniform(k4, (3, 5, 7, 11), jnp.float32)
    l2 = jax.block_until_ready(loss_fn(p2, t2))
    r2 = 0.01 * jnp.mean(jnp.abs(p2 - t2))
    assert abs(float(l2) - float(r2)) < 1e-6 * max(1.0, abs(float(r2)))

    print("KERNEL_OK")
</pallas_src>

<mosaic_0001>
module attributes {stable_mosaic.version = 11 : i64} {
  func.func @_l1_sum_kernel(%arg0: i32, %arg1: i32, %arg2: memref<16x128xf32, #tpu.memory_space<vmem>>, %arg3: memref<16x128xf32, #tpu.memory_space<vmem>>, %arg4: memref<1x8x128xf32, #tpu.memory_space<vmem>>, %arg5: memref<8x128xf32, #tpu.memory_space<vmem>>) attributes {dimension_semantics = [#tpu.dimension_semantics<parallel>, #tpu.dimension_semantics<arbitrary>], iteration_bounds = array<i64: 2, 1>, scalar_prefetch = 0 : i64, scratch_operands = 1 : i64, tpu.core_type = #tpu.core_type<tc>, window_params = [{transform_indices = @transform_0, window_bounds = array<i64: 16, 128>}, {transform_indices = @transform_1, window_bounds = array<i64: 16, 128>}, {transform_indices = @transform_2, window_bounds = array<i64: 1, 8, 128>}]} {
    %c1_i32 = arith.constant 1 : i32
    %0 = arith.muli %arg0, %c1_i32 : i32
    %1 = arith.addi %0, %arg1 : i32
    %c0_i32 = arith.constant 0 : i32
    %2 = arith.cmpi eq, %arg1, %c0_i32 : i32
    %3 = arith.extui %2 : i1 to i32
    %c0_i32_0 = arith.constant 0 : i32
    %4 = arith.cmpi ne, %3, %c0_i32_0 : i32
    scf.if %4 {
      %cst = arith.constant 0.000000e+00 : f32
      %20 = vector.broadcast %cst : f32 to vector<8x128xf32>
      %c0_10 = arith.constant 0 : index
      %c0_11 = arith.constant 0 : index
      %21 = vector.load %arg5[%c0_10, %c0_11] : memref<8x128xf32, #tpu.memory_space<vmem>>, vector<8x128xf32>
      tpu.vector_store %arg5[%c0_10, %c0_11], %20 {strides = array<i32>} : memref<8x128xf32, #tpu.memory_space<vmem>>, vector<8x128xf32>,
    } else {
    }
    %c0 = arith.constant 0 : index
    %c0_1 = arith.constant 0 : index
    %5 = vector.load %arg2[%c0, %c0_1] : memref<16x128xf32, #tpu.memory_space<vmem>>, vector<16x128xf32>
    %c0_2 = arith.constant 0 : index
    %c0_3 = arith.constant 0 : index
    %6 = vector.load %arg3[%c0_2, %c0_3] : memref<16x128xf32, #tpu.memory_space<vmem>>, vector<16x128xf32>
    %7 = arith.subf %5, %6 : vector<16x128xf32>
    %8 = math.absf %7 : vector<16x128xf32>
    %c1_i32_4 = arith.constant 1 : i32
    %9 = arith.addi %1, %c1_i32_4 : i32
    %c16_i32 = arith.constant 16 : i32
    %10 = arith.muli %9, %c16_i32 : i32
    %c16_i32_5 = arith.constant 16 : i32
    %11 = arith.cmpi sle, %10, %c16_i32_5 : i32
    %12 = arith.extui %11 : i1 to i32
    %c0_i32_6 = arith.constant 0 : i32
    %13 = arith.cmpi ne, %12, %c0_i32_6 : i32
    scf.if %13 {
      %c0_10 = arith.constant 0 : index
      %c0_11 = arith.constant 0 : index
      %20 = vector.load %arg5[%c0_10, %c0_11] : memref<8x128xf32, #tpu.memory_space<vmem>>, vector<8x128xf32>
      %21 = vector.shape_cast %8 : vector<16x128xf32> to vector<2x8x128xf32>
      %cst = arith.constant dense<0.000000e+00> : vector<8x128xf32>
      %22 = vector.multi_reduction <add>, %21, %cst [0] : vector<2x8x128xf32> to vector<8x128xf32>
      %23 = arith.addf %20, %22 : vector<8x128xf32>
      %c0_12 = arith.constant 0 : index
      %c0_13 = arith.constant 0 : index
      %24 = vector.load %arg5[%c0_12, %c0_13] : memref<8x128xf32, #tpu.memory_space<vmem>>, vector<8x128xf32>
      tpu.vector_store %arg5[%c0_12, %c0_13], %23 {strides = array<i32>} : memref<8x128xf32, #tpu.memory_space<vmem>>, vector<8x128xf32>,
    } else {
    }
    %true = arith.constant true
    %14 = arith.xori %11, %true : i1
    %15 = arith.extui %14 : i1 to i32
    %c0_i32_7 = arith.constant 0 : i32
    %16 = arith.cmpi ne, %15, %c0_i32_7 : i32
    scf.if %16 {
      %20 = tpu.iota {dimensions = array<i32: 0>} : vector<16x128xi32>
      %c16_i32_10 = arith.constant 16 : i32
      %21 = arith.muli %1, %c16_i32_10 : i32
      %22 = vector.broadcast %21 : i32 to vector<16x128xi32>
      %23 = arith.addi %20, %22 : vector<16x128xi32>
      %c16_i32_11 = arith.constant 16 : i32
      %24 = vector.broadcast %c16_i32_11 : i32 to vector<16x128xi32>
      %25 = arith.cmpi slt, %23, %24 : vector<16x128xi32>
      %cst = arith.constant 0.000000e+00 : f32
      %26 = vector.broadcast %cst : f32 to vector<16x128xf32>
      %27 = arith.select %25, %8, %26 : vector<16x128xi1>, vector<16x128xf32>
      %c0_12 = arith.constant 0 : index
      %c0_13 = arith.constant 0 : index
      %28 = vector.load %arg5[%c0_12, %c0_13] : memref<8x128xf32, #tpu.memory_space<vmem>>, vector<8x128xf32>
      %29 = vector.shape_cast %27 : vector<16x128xf32> to vector<2x8x128xf32>
      %cst_14 = arith.constant dense<0.000000e+00> : vector<8x128xf32>
      %30 = vector.multi_reduction <add>, %29, %cst_14 [0] : vector<2x8x128xf32> to vector<8x128xf32>
      %31 = arith.addf %28, %30 : vector<8x128xf32>
      %c0_15 = arith.constant 0 : index
      %c0_16 = arith.constant 0 : index
      %32 = vector.load %arg5[%c0_15, %c0_16] : memref<8x128xf32, #tpu.memory_space<vmem>>, vector<8x128xf32>
      tpu.vector_store %arg5[%c0_15, %c0_16], %31 {strides = array<i32>} : memref<8x128xf32, #tpu.memory_space<vmem>>, vector<8x128xf32>,
    } else {
    }
    %c0_i32_8 = arith.constant 0 : i32
    %17 = arith.cmpi eq, %arg1, %c0_i32_8 : i32
    %18 = arith.extui %17 : i1 to i32
    %c0_i32_9 = arith.constant 0 : i32
    %19 = arith.cmpi ne, %18, %c0_i32_9 : i32
    scf.if %19 {
      %c0_10 = arith.constant 0 : index
      %c0_11 = arith.constant 0 : index
      %20 = vector.load %arg5[%c0_10, %c0_11] : memref<8x128xf32, #tpu.memory_space<vmem>>, vector<8x128xf32>
      %c0_12 = arith.constant 0 : index
      %c0_13 = arith.constant 0 : index
      %c0_14 = arith.constant 0 : index
      %21 = vector.load %arg4[%c0_12, %c0_13, %c0_14] : memref<1x8x128xf32, #tpu.memory_space<vmem>>, vector<1x8x128xf32>
      %22 = vector.shape_cast %21 : vector<1x8x128xf32> to vector<8x128xf32>
      %23 = vector.shape_cast %20 : vector<8x128xf32> to vector<1x8x128xf32>
      tpu.vector_store %arg4[%c0_12, %c0_13, %c0_14], %23 {strides = array<i32>} : memref<1x8x128xf32, #tpu.memory_space<vmem>>, vector<1x8x128xf32>,
    } else {
    }
    return
  }
  func.func @transform_0(%arg0: i32, %arg1: i32) -> (i32, i32) {
    %c1_i32 = arith.constant 1 : i32
    %0 = arith.muli %arg0, %c1_i32 : i32
    %1 = arith.addi %0, %arg1 : i32
    %c0_i32 = arith.constant 0 : i32
    %c0_i32_0 = arith.constant 0 : i32
    return %1, %c0_i32 : i32, i32
  }
  func.func @transform_1(%arg0: i32, %arg1: i32) -> (i32, i32) {
    %c1_i32 = arith.constant 1 : i32
    %0 = arith.muli %arg0, %c1_i32 : i32
    %1 = arith.addi %0, %arg1 : i32
    %c0_i32 = arith.constant 0 : i32
    %c0_i32_0 = arith.constant 0 : i32
    return %1, %c0_i32 : i32, i32
  }
  func.func @transform_2(%arg0: i32, %arg1: i32) -> (i32, i32, i32) {
    %c0_i32 = arith.constant 0 : i32
    %c0_i32_0 = arith.constant 0 : i32
    %c0_i32_1 = arith.constant 0 : i32
    return %arg0, %c0_i32, %c0_i32_0 : i32, i32, i32
  }
}

</mosaic_0001>

<llo_original>
// kernel: tpu_custom_call.1
$region0: #{tpu_custom_call.1}
  #allocation0 [shape = 'u32[]', space=smem, size = 0x4, offset = 0x4, fixed_abs, tag = 'smem constant byte address 0x4 - core index']
  #allocation1 [shape = 'u32[144,128]{1,0:T(1,128)}', space=vmem, size = 0x12000, scoped, tag = 'internal scratch']
  #allocation2 [shape = 'f32[8,128]{1,0:T(8,128)}', space=vmem, size = 0x1000, scoped, tag = 'scratch operand']
  %s0 = inlined_call_operand.hbm [shape: f32[16,128], index: 0, kind: input, shape index: {}]
  %s1 = inlined_call_operand.hbm [shape: f32[16,128], index: 1, kind: input, shape index: {}]
  %s2 = inlined_call_operand.hbm [shape: f32[2,8,128], index: 2, kind: output, shape index: {}]
  %s3 = sld [smem:[#allocation0]]
  $region65: #{tpu_custom_call.1} parent=0
    _
  %s5 = ssub.s32 1, %s3
  %s6 = scalar_select 0, %s5, %s3
  $region1: #{tpu_custom_call.1} parent=0
    #allocation3 [shape = 'u8[16384]{0}', space=vmem, size = 0x4000, scoped, tag = 'input window, operand 0']
    #allocation4 [shape = 's32[2]{0}', space=sflag, size = 0x8, scoped, tag = 'scoped memory for tpu_custom_call.1']
    #allocation5 [shape = 's32[2]{0}', space=sflag, size = 0x8, scoped, tag = 'scoped memory for tpu_custom_call.1']
    #allocation6 [shape = 'u8[16384]{0}', space=vmem, size = 0x4000, scoped, tag = 'input window, operand 1']
    #allocation7 [shape = 's32[2]{0}', space=sflag, size = 0x8, scoped, tag = 'scoped memory for tpu_custom_call.1']
    #allocation8 [shape = 'u8[8192]{0}', space=vmem, size = 0x2000, scoped, tag = 'output window, operand 0']
    %7 = vsyncpa [#allocation4], 0
    %s8 = scalar_lea.sflag [#allocation4], 1
    %9 = vsyncpa %s8, 0
    %10 = vsyncpa [#allocation7], 0
    %s11 = scalar_lea.sflag [#allocation7], 1
    %12 = vsyncpa %s11, 0
    %13 = vsyncpa [#allocation5], 0
    %s14 = scalar_lea.sflag [#allocation5], 1
    %15 = vsyncpa %s14, 0
    loop: start=0, step=1, limit=4
    $region2: #{tpu_custom_call.1} parent=1 // loop_pre_header
      _
    $region3: #{tpu_custom_call.1} parent=1 // loop_header
      %s17 = sphi 0, %s21
      %p18 = scmp.ge.s32.totalorder %s17, 4
      %s24 = sphi 0, %s36
      %s25 = sphi 0, %s32
      %s26 = sphi 0, %s24
      %s27 = sphi 0, %s25
      %s28 = sphi 0, %s26
      %s29 = sphi 0, %s27
      %s41 = sphi 0, %s43
      %s44 = sphi 0, %s41
      %s45 = sphi 0, %s44
      %s61 = sphi 0, %s45
      %s69 = sphi 0, %s71
      %s72 = sphi 0, %s69
      %s73 = sphi 0, %s72
      %s89 = sphi 0, %s73
      %s95 = sphi 0, %s97
      %s98 = sphi 0, %s95
      %s99 = sphi 0, %s98
      %s115 = sphi 0, %s99
    $region4: #{tpu_custom_call.1} parent=1 // loop_header_branch
      %20 = sbr.rel (%p18) target = $region8
    $region5: #{tpu_custom_call.1} parent=1 // loop_body
      %s22 = ssub.s32 %s17, 1
      %s23 = ssub.s32 %s17, 2
      %s30 = sadd.s32 1, %s25
      %p31 = scmp.ge.s32.totalorder %s30, 1
      %s32 = scalar_select %p31, 0, %s30
      %s33 = sadd.s32 1, %s24
      %s34 = scalar_select %p31, %s33, %s24
      %p35 = scmp.ge.s32.totalorder %s34, 2
      %s36 = scalar_select %p35, 0, %s34
      %s37 = sadd.s32 %s24, %s25
      %s38 = sadd.s32 %s36, %s32
      %s39 = ssub.s32 %s37, %s38
      %p40 = scmp.eq.s32.totalorder %s39, 0
      %s42 = sadd.s32 %s41, 1
      %s43 = scalar_select %p40, %s41, %s42
      %p46 = pneg %p40
      %p47 = scmp.eq.s32.totalorder %s17, 1
      %p48 = por %p46, %p47
      %p49 = scmp.ne.s32.totalorder %s41, %s44
      %p50 = scmp.eq.s32.totalorder %s17, 0
      %p51 = por %p49, %p50
      %p52 = scmp.ne.s32.totalorder %s41, %s44
      %p53 = scmp.eq.s32.totalorder %s22, 1
      %p54 = por %p52, %p53
      %p55 = scmp.ne.s32.totalorder %s44, %s45
      %p56 = scmp.eq.s32.totalorder %s22, 0
      %p57 = por %p55, %p56
      %p58 = scmp.ne.s32.totalorder %s44, %s45
      %p59 = scmp.eq.s32.totalorder %s23, 1
      %p60 = por %p58, %p59
      %p62 = scmp.ne.s32.totalorder %s45, %s61
      %p63 = scmp.eq.s32.totalorder %s23, 0
      %p64 = por %p62, %p63
      %s65 = sadd.s32 %s24, %s25
      %s66 = sadd.s32 %s36, %s32
      %s67 = ssub.s32 %s65, %s66
      %p68 = scmp.eq.s32.totalorder %s67, 0
      %s70 = sadd.s32 %s69, 1
      %s71 = scalar_select %p68, %s69, %s70
      %p74 = pneg %p68
      %p75 = scmp.eq.s32.totalorder %s17, 1
      %p76 = por %p74, %p75
      %p77 = scmp.ne.s32.totalorder %s69, %s72
      %p78 = scmp.eq.s32.totalorder %s17, 0
      %p79 = por %p77, %p78
      %p80 = scmp.ne.s32.totalorder %s69, %s72
      %p81 = scmp.eq.s32.totalorder %s22, 1
      %p82 = por %p80, %p81
      %p83 = scmp.ne.s32.totalorder %s72, %s73
      %p84 = scmp.eq.s32.totalorder %s22, 0
      %p85 = por %p83, %p84
      %p86 = scmp.ne.s32.totalorder %s72, %s73
      %p87 = scmp.eq.s32.totalorder %s23, 1
      %p88 = por %p86, %p87
      %p90 = scmp.ne.s32.totalorder %s73, %s89
      %p91 = scmp.eq.s32.totalorder %s23, 0
      %p92 = por %p90, %p91
      %s93 = ssub.s32 %s24, %s36
      %p94 = scmp.eq.s32.totalorder %s93, 0
      %s96 = sadd.s32 %s95, 1
      %s97 = scalar_select %p94, %s95, %s96
      %p100 = pneg %p94
      %p101 = scmp.eq.s32.totalorder %s17, 1
      %p102 = por %p100, %p101
      %p103 = scmp.ne.s32.totalorder %s95, %s98
      %p104 = scmp.eq.s32.totalorder %s17, 0
      %p105 = por %p103, %p104
      %p106 = scmp.ne.s32.totalorder %s95, %s98
      %p107 = scmp.eq.s32.totalorder %s22, 1
      %p108 = por %p106, %p107
      %p109 = scmp.ne.s32.totalorder %s98, %s99
      %p110 = scmp.eq.s32.totalorder %s22, 0
      %p111 = por %p109, %p110
      %p112 = scmp.ne.s32.totalorder %s98, %s99
      %p113 = scmp.eq.s32.totalorder %s23, 1
      %p114 = por %p112, %p113
      %p116 = scmp.ne.s32.totalorder %s99, %s115
      %p117 = scmp.eq.s32.totalorder %s23, 0
      %p118 = por %p116, %p117
      %p119 = scmp.le.s32.totalorder 1, %s17
      %p120 = scmp.lt.s32.totalorder %s17, 3
      %p121 = pnand %p119, %p120
      %p122 = pneg %p121
      // Predicated region
      $region9: #{tpu_custom_call.1} parent=5 // pred_check
        _
      $region10: #{tpu_custom_call.1} parent=5 // pred_check_branch
        %124 = sbr.rel (%p121) target = $region12
      $region11: #{tpu_custom_call.1} parent=5 // pred_region
        %s125 = ssub.s32 %s17, 1
      $region12: #{tpu_custom_call.1} parent=5 // pred_fallthru
        _
      %p126 = scmp.lt.s32.totalorder %s17, 2
      // Predicated region
      $region13: #{tpu_custom_call.1} parent=5 // pred_check
        %p127 = pneg %p126
      $region14: #{tpu_custom_call.1} parent=5 // pred_check_branch
        %129 = sbr.rel (%p127) target = $region16
      $region15: #{tpu_custom_call.1} parent=5 // pred_region
        // Predicated region
        $region17: #{tpu_custom_call.1} parent=15 // pred_check
          %p130 = pneg %p51
        $region18: #{tpu_custom_call.1} parent=15 // pred_check_branch
          %132 = sbr.rel (%p130) target = $region20
        $region19: #{tpu_custom_call.1} parent=15 // pred_region
          %s133 = sand.u32 %s41, 1
          %s134 = scalar_lea.sflag [#allocation4], %s133
          %s135 = sand.u32 %s41, 1
          %s136 = smul.addr %s135, 16
          %s137 = scalar_lea.vmem [#allocation3], %s136
          %s138 = sadd.s32 %s24, %s25
          %s139 = smul.u32 2, %s138
          %s141 = ssub.s32 256, 256
          %142 = vsyncadd %s134, %s141
          %s143 = smul.addr %s139, 128
          %s144 = scalar_lea.hbm %s0, %s143
          %s145 = sshll.u32 %s137, 4
          %s146 = int_to_ptr.vmem [resolvable:$true] %s145
          %151 = dma.hbm_to_vmem [thread:$0]  %s144, 256, %s146, %s134, 128, 128, 8
        $region20: #{tpu_custom_call.1} parent=15 // pred_fallthru
          _
        // Predicated region
        $region21: #{tpu_custom_call.1} parent=15 // pred_check
          %p152 = pneg %p79
        $region22: #{tpu_custom_call.1} parent=15 // pred_check_branch
          %154 = sbr.rel (%p152) target = $region24
        $region23: #{tpu_custom_call.1} parent=15 // pred_region
          %s155 = sand.u32 %s69, 1
          %s156 = scalar_lea.sflag [#allocation7], %s155
          %s157 = sand.u32 %s69, 1
          %s158 = smul.addr %s157, 16
          %s159 = scalar_lea.vmem [#allocation6], %s158
          %s160 = sadd.s32 %s24, %s25
          %s161 = smul.u32 2, %s160
          %s163 = ssub.s32 256, 256
          %164 = vsyncadd %s156, %s163
          %s165 = smul.addr %s161, 128
          %s166 = scalar_lea.hbm %s1, %s165
          %s167 = sshll.u32 %s159, 4
          %s168 = int_to_ptr.vmem [resolvable:$true] %s167
          %173 = dma.hbm_to_vmem [thread:$0]  %s166, 256, %s168, %s156, 128, 128, 8
        $region24: #{tpu_custom_call.1} parent=15 // pred_fallthru
          _
      $region16: #{tpu_custom_call.1} parent=5 // pred_fallthru
        _
      %p174 = scmp.le.s32.totalorder 1, %s17
      %p175 = scmp.lt.s32.totalorder %s17, 3
      %p176 = pnand %p174, %p175
      %p177 = pneg %p176
      // Predicated region
      $region25: #{tpu_custom_call.1} parent=5 // pred_check
        _
      $region26: #{tpu_custom_call.1} parent=5 // pred_check_branch
        %179 = sbr.rel (%p176) target = $region28
      $region27: #{tpu_custom_call.1} parent=5 // pred_region
        %s180 = ssub.s32 %s17, 1
        %s181 = sand.u32 %s44, 1
        %s182 = scalar_lea.sflag [#allocation4], %s181
        %s183 = sand.u32 %s44, 1
        %s184 = smul.addr %s183, 16
        %s185 = scalar_lea.vmem [#allocation3], %s184
        // Predicated region
        $region29: #{tpu_custom_call.1} parent=27 // pred_check
          %p186 = pneg %p57
        $region30: #{tpu_custom_call.1} parent=27 // pred_check_branch
          %188 = sbr.rel (%p186) target = $region32
        $region31: #{tpu_custom_call.1} parent=27 // pred_region
          %189 = dma.done %s182, 256
        $region32: #{tpu_custom_call.1} parent=27 // pred_fallthru
          _
        %s190 = sand.u32 %s72, 1
        %s191 = scalar_lea.sflag [#allocation7], %s190
        %s192 = sand.u32 %s72, 1
        %s193 = smul.addr %s192, 16
        %s194 = scalar_lea.vmem [#allocation6], %s193
        // Predicated region
        $region33: #{tpu_custom_call.1} parent=27 // pred_check
          %p195 = pneg %p85
        $region34: #{tpu_custom_call.1} parent=27 // pred_check_branch
          %197 = sbr.rel (%p195) target = $region36
        $region35: #{tpu_custom_call.1} parent=27 // pred_region
          %198 = dma.done %s191, 256
        $region36: #{tpu_custom_call.1} parent=27 // pred_fallthru
          _
        %s199 = sand.u32 %s44, 1
        %s200 = scalar_lea.sflag [#allocation4], %s199
        %s201 = sand.u32 %s44, 1
        %s202 = smul.addr %s201, 16
        %s203 = scalar_lea.vmem [#allocation3], %s202
        %p204 = pneg %p57
        %p205 = pneg %p54
        %s206 = sand.u32 %s72, 1
        %s207 = scalar_lea.sflag [#allocation7], %s206
        %s208 = sand.u32 %s72, 1
        %s209 = smul.addr %s208, 16
        %s210 = scalar_lea.vmem [#allocation6], %s209
        %p211 = pneg %p85
        %p212 = pneg %p82
        %p213 = pneg %p111
        %p214 = pneg %p108
        %s215 = sand.u32 %s98, 1
        %s216 = scalar_lea.sflag [#allocation5], %s215
        %s217 = sand.u32 %s98, 1
        %s218 = smul.addr %s217, 8
        %s219 = scalar_lea.vmem [#allocation8], %s218
        %s220 = sadd.s32 %s26, %s27
        %s221 = smul.u32 2, %s220
        %s222 = sadd.s32 %s26, %s27
        %s223 = smul.u32 2, %s222
        %s224 = sadd.s32 %s26, %s27
        %p225 = scmp.eq.s32.totalorder %s27, 0
        // Predicated region
        $region37: #{tpu_custom_call.1} parent=27 // pred_check
          %p226 = pneg %p225
        $region38: #{tpu_custom_call.1} parent=27 // pred_check_branch
          %228 = sbr.rel (%p226) target = $region40
        $region39: #{tpu_custom_call.1} parent=27 // pred_region
          %229 = vst [vmem:[#allocation2] sm:$0xff] 0.0
        $region40: #{tpu_custom_call.1} parent=27 // pred_fallthru
          _
        %v230 = vld [vmem:[%s185] sm:$0xff]
        %v231 = vld [vmem:[%s185 + $0x8] sm:$0xff]
        %v232 = vld [vmem:[%s194] sm:$0xff]
        %v233 = vld [vmem:[%s194 + $0x8] sm:$0xff]
        %v234 = vsub.f32 %v230, %v232
        %v235 = vsub.f32 %v231, %v233
        %v236 = vand.u32 2147483647, %v234
        %v237 = vand.u32 2147483647, %v235
        %s238 = sadd.s32 %s224, 1
        %s239 = smul.u32 %s238, 16
        %p240 = scmp.le.s32.totalorder %s239, 16
        // Predicated region
        $region41: #{tpu_custom_call.1} parent=27 // pred_check
          %p241 = pneg %p240
        $region42: #{tpu_custom_call.1} parent=27 // pred_check_branch
          %243 = sbr.rel (%p241) target = $region44
        $region43: #{tpu_custom_call.1} parent=27 // pred_region
          %v244 = vld [vmem:[#allocation2] sm:$0xff]
          %v245 = vadd.f32 %v236, %v237
          %v246 = vadd.f32 %v244, %v245
          %247 = vst [vmem:[#allocation2] sm:$0xff] %v246
        $region44: #{tpu_custom_call.1} parent=27 // pred_fallthru
          _
        %p248 = scmp.gt.s32.totalorder %s239, 16
        // Predicated region
        $region45: #{tpu_custom_call.1} parent=27 // pred_check
          %p249 = pneg %p248
        $region46: #{tpu_custom_call.1} parent=27 // pred_check_branch
          %251 = sbr.rel (%p249) target = $region48
        $region47: #{tpu_custom_call.1} parent=27 // pred_region
          %v252 = vlaneseq
          %v253 = vshrl.u32 %v252, 7
          %v254 = vadd.s32 %v253, 8
          %s255 = smul.u32 %s224, 16
          %v256 = vstv %s255
          %v257 = vadd.s32 %v253, %v256
          %v258 = vadd.s32 %v254, %v256
          %vm259 = vcmp.lt.s32.totalorder %v257, 16
          %vm260 = vcmp.lt.s32.totalorder %v258, 16
          %v261 = vsel %vm259, %v236, 0.0
          %v262 = vsel %vm260, %v237, 0.0
          %v263 = vld [vmem:[#allocation2] sm:$0xff]
          %v264 = vadd.f32 %v261, %v262
          %v265 = vadd.f32 %v263, %v264
          %266 = vst [vmem:[#allocation2] sm:$0xff] %v265
        $region48: #{tpu_custom_call.1} parent=27 // pred_fallthru
          _
        // Predicated region
        $region49: #{tpu_custom_call.1} parent=27 // pred_check
          %p267 = pneg %p225
        $region50: #{tpu_custom_call.1} parent=27 // pred_check_branch
          %269 = sbr.rel (%p267) target = $region52
        $region51: #{tpu_custom_call.1} parent=27 // pred_region
          %v270 = vld [vmem:[#allocation2] sm:$0xff]
          %271 = vst [vmem:[%s219] sm:$0xff] %v270
        $region52: #{tpu_custom_call.1} parent=27 // pred_fallthru
          _
        %s272 = sand.u32 %s98, 1
        %s273 = scalar_lea.sflag [#allocation5], %s272
        %s274 = sand.u32 %s98, 1
        %s275 = smul.addr %s274, 8
        %s276 = scalar_lea.vmem [#allocation8], %s275
        // Predicated region
        $region53: #{tpu_custom_call.1} parent=27 // pred_check
          %p277 = pneg %p108
        $region54: #{tpu_custom_call.1} parent=27 // pred_check_branch
          %279 = sbr.rel (%p277) target = $region56
        $region55: #{tpu_custom_call.1} parent=27 // pred_region
          %s281 = ssub.s32 128, 128
          %282 = vsyncadd %s273, %s281
          %s283 = smul.addr %s26, 128
          %s284 = scalar_lea.hbm %s2, %s283
          %s286 = sshll.u32 %s276, 4
          %s287 = int_to_ptr.vmem [resolvable:$true] %s286
          %289 = dma.vmem_to_hbm [thread:$0]  %s287, 128, %s284, %s273
        $region56: #{tpu_custom_call.1} parent=27 // pred_fallthru
          _
      $region28: #{tpu_custom_call.1} parent=5 // pred_fallthru
        _
      %p290 = scmp.le.s32.totalorder 2, %s17
      // Predicated region
      $region57: #{tpu_custom_call.1} parent=5 // pred_check
        %p291 = pneg %p290
      $region58: #{tpu_custom_call.1} parent=5 // pred_check_branch
        %293 = sbr.rel (%p291) target = $region60
      $region59: #{tpu_custom_call.1} parent=5 // pred_region
        %s294 = ssub.s32 %s17, 2
        // Predicated region
        $region61: #{tpu_custom_call.1} parent=59 // pred_check
          %p295 = pneg %p114
        $region62: #{tpu_custom_call.1} parent=59 // pred_check_branch
          %297 = sbr.rel (%p295) target = $region64
        $region63: #{tpu_custom_call.1} parent=59 // pred_region
          %s298 = sand.u32 %s99, 1
          %s299 = scalar_lea.sflag [#allocation5], %s298
          %s300 = sand.u32 %s99, 1
          %s301 = smul.addr %s300, 8
          %s302 = scalar_lea.vmem [#allocation8], %s301
          %303 = dma.done %s299, 128
        $region64: #{tpu_custom_call.1} parent=59 // pred_fallthru
          _
      $region60: #{tpu_custom_call.1} parent=5 // pred_fallthru
        _
    $region6: #{tpu_custom_call.1} parent=1 // loop_footer
      %s21 = sadd.s32 1, %s17
    $region7: #{tpu_custom_call.1} parent=1 // loop_footer_branch
      %16 = sbr.rel target = $region3
    $region8: #{tpu_custom_call.1} parent=1 // loop_exit
      _
    %304 = vsyncpa [#allocation4], 1
    %s305 = scalar_lea.sflag [#allocation4], 1
    %306 = vsyncpa %s305, 1
    %307 = vsyncpa [#allocation7], 1
    %s308 = scalar_lea.sflag [#allocation7], 1
    %309 = vsyncpa %s308, 1
    %310 = vsyncpa [#allocation5], 1
    %s311 = scalar_lea.sflag [#allocation5], 1
    %312 = vsyncpa %s311, 1

</llo_original>
